<compile_context>
chip_gen: v7x
topology: tpu7x:2x2x1
jax: 0.10.0
libtpu: 0.0.40
codegen_flags: <defaults>
</compile_context>

<pallas_src>
import functools

import jax
import jax.numpy as jnp
from jax.experimental import pallas as pl
from jax.experimental.pallas import tpu as pltpu

_BN_EPS = 1e-5


# ----------------------------------------------------------------------------- #
# Kernel 1: first matmul + BN batch statistics, h cached as bf16.
# ----------------------------------------------------------------------------- #
def _stats_kernel(x_ref, w1_ref, gamma_ref, beta_ref,
                  h_ref, scale_ref, shift_ref,
                  sum_ref, sumsq_ref,
                  *, n_rows, tile_n):
    t = pl.program_id(0)
    nt = pl.num_programs(0)

    @pl.when(t == 0)
    def _init():
        sum_ref[...] = jnp.zeros_like(sum_ref)
        sumsq_ref[...] = jnp.zeros_like(sumsq_ref)

    # First linear layer: bf16 operands (weights pre-cast in the wrapper; the x
    # tile is cast here exactly once), f32 accumulation on the MXU.
    h = jnp.dot(x_ref[...].astype(jnp.bfloat16), w1_ref[...],
                preferred_element_type=jnp.float32)            # (tile_n, H) f32

    # Cache h for the apply kernel (avoids recomputing the first matmul and
    # re-streaming x from HBM).  Padding rows of a partial last tile are clipped
    # on writeback, so their garbage contents never reach HBM.
    h_ref[...] = h.astype(h_ref.dtype)

    # Mask padding rows of a partial last tile out of the statistics.
    if n_rows % tile_n != 0:
        row = jax.lax.broadcasted_iota(jnp.int32, (tile_n, 1), 0) + t * tile_n
        hm = jnp.where(row < n_rows, h, 0.0)
    else:
        hm = h

    # Accumulate per-feature sum / sum-of-squares into (8, H) so the per-tile
    # reduction stays on the VPU; the cross-sublane collapse happens once below.
    h_dim = hm.shape[1]
    if tile_n % 8 == 0:
        part = hm.reshape(tile_n // 8, 8, h_dim)
        sum_ref[...] += jnp.sum(part, axis=0)
        sumsq_ref[...] += jnp.sum(part * part, axis=0)
    else:  # single small tile fallback
        sum_ref[0:1, :] += jnp.sum(hm, axis=0, keepdims=True)
        sumsq_ref[0:1, :] += jnp.sum(hm * hm, axis=0, keepdims=True)

    @pl.when(t == nt - 1)
    def _finalize():
        inv_n = 1.0 / float(n_rows)
        mean = jnp.sum(sum_ref[...], axis=0, keepdims=True) * inv_n
        ex2 = jnp.sum(sumsq_ref[...], axis=0, keepdims=True) * inv_n
        # Clamp: E[x^2] - E[x]^2 can go slightly negative in f32 (cancellation),
        # which would give NaN out of rsqrt.
        var = jnp.maximum(ex2 - mean * mean, 0.0)              # biased batch variance
        scale = gamma_ref[...] * jax.lax.rsqrt(var + _BN_EPS)
        scale_ref[...] = scale
        shift_ref[...] = beta_ref[...] - mean * scale


# ----------------------------------------------------------------------------- #
# Kernel 2: folded BN affine + ReLU + second matmul (+ bias).  Batch-parallel.
# ----------------------------------------------------------------------------- #
def _apply_kernel(h_ref, scale_ref, shift_ref, w2_ref, b2_ref, o_ref):
    hn = jnp.maximum(
        h_ref[...].astype(jnp.float32) * scale_ref[...] + shift_ref[...], 0.0)
    out = jnp.dot(hn.astype(jnp.bfloat16), w2_ref[...],
                  preferred_element_type=jnp.float32) + b2_ref[...]
    o_ref[...] = out.astype(o_ref.dtype)


def _vmem_limit(est_bytes):
    """Generation-aware VMEM limit with headroom (v7x has only 64 MiB/TC)."""
    try:
        cap = int(pltpu.get_tpu_info().vmem_capacity_bytes)
    except Exception:                                          # pragma: no cover
        cap = 64 * 2**20                                       # conservative fallback
    limit = max(2 * int(est_bytes), 16 * 2**20)
    return int(min(limit, int(0.6 * cap)))


def prediction_mlp(x, w1_t, gamma, beta, w2_t, b2, *, block_n=512):
    """x: (N, D); w1_t: (D, H); gamma/beta: (H,); w2_t: (H, O); b2: (O,)."""
    n, d = x.shape
    h_dim = w1_t.shape[1]
    o_dim = w2_t.shape[1]
    out_dtype = x.dtype

    # Pre-cast weights to bf16 once (one-time DMA, no per-step VPU casts, half the
    # resident weight VMEM).  x is left as-is; its tiles are visited once each and
    # cast in-kernel (a wrapper cast would add an extra HBM pass over x).
    w1_bf = w1_t.astype(jnp.bfloat16)
    w2_bf = w2_t.astype(jnp.bfloat16)
    gamma2 = gamma.reshape(1, h_dim).astype(jnp.float32)
    beta2 = beta.reshape(1, h_dim).astype(jnp.float32)
    b22 = b2.reshape(1, o_dim).astype(jnp.float32)

    tile_n = min(block_n, n)
    if tile_n < n and tile_n % 8 != 0:        # sublane divisibility for partial blocks
        tile_n = max(8, (tile_n // 8) * 8)
    num_tiles = pl.cdiv(n, tile_n)

    x_bytes = x.dtype.itemsize

    # ---------------- pass 1: stats + cached h ----------------
    stats_cost = pl.CostEstimate(
        flops=2 * n * d * h_dim + 4 * n * h_dim,
        transcendentals=h_dim,
        bytes_accessed=n * d * x_bytes + d * h_dim * 2 + n * h_dim * 2 + 6 * h_dim * 4,
    )
    stats_est = (2 * tile_n * d * x_bytes           # x tiles (double-buffered)
                 + 2 * d * h_dim * 2                # W1 bf16
                 + 2 * tile_n * h_dim * 2           # h output tiles
                 + 2 * 4 * h_dim * 4                # gamma/beta/scale/shift blocks
                 + 2 * 8 * h_dim * 4)               # stat scratch
    h_bf, scale, shift = pl.pallas_call(
        functools.partial(_stats_kernel, n_rows=n, tile_n=tile_n),
        out_shape=(
            jax.ShapeDtypeStruct((n, h_dim), jnp.bfloat16),    # cached h
            jax.ShapeDtypeStruct((1, h_dim), jnp.float32),     # BN scale (folded)
            jax.ShapeDtypeStruct((1, h_dim), jnp.float32),     # BN shift (folded)
        ),
        grid_spec=pltpu.PrefetchScalarGridSpec(
            num_scalar_prefetch=0,
            grid=(num_tiles,),
            in_specs=[
                pl.BlockSpec((tile_n, d), lambda t: (t, 0)),    # x, tiled over N
                pl.BlockSpec((d, h_dim), lambda t: (0, 0)),     # W1^T bf16, resident
                pl.BlockSpec((1, h_dim), lambda t: (0, 0)),     # gamma
                pl.BlockSpec((1, h_dim), lambda t: (0, 0)),     # beta
            ],
            out_specs=(
                pl.BlockSpec((tile_n, h_dim), lambda t: (t, 0)),
                pl.BlockSpec((1, h_dim), lambda t: (0, 0)),
                pl.BlockSpec((1, h_dim), lambda t: (0, 0)),
            ),
            scratch_shapes=[
                pltpu.VMEM((8, h_dim), jnp.float32),            # partial sum(h)
                pltpu.VMEM((8, h_dim), jnp.float32),            # partial sum(h*h)
            ],
        ),
        compiler_params=pltpu.CompilerParams(
            # BN accumulator must see every batch tile sequentially on one core.
            dimension_semantics=("arbitrary",),
            vmem_limit_bytes=_vmem_limit(stats_est),
        ),
        cost_estimate=stats_cost,
    )(x, w1_bf, gamma2, beta2)

    # ---------------- pass 2: BN/ReLU + second matmul (batch-parallel) ----------------
    apply_cost = pl.CostEstimate(
        flops=2 * n * h_dim * o_dim + 3 * n * h_dim,
        transcendentals=0,
        bytes_accessed=n * h_dim * 2 + h_dim * o_dim * 2 + n * o_dim * 4
        + 2 * h_dim * 4 + o_dim * 4,
    )
    apply_est = (2 * tile_n * h_dim * 2             # h tiles
                 + 2 * h_dim * o_dim * 2            # W2 bf16
                 + 2 * tile_n * o_dim * 4           # out tiles
                 + 2 * 3 * max(h_dim, o_dim) * 4)   # scale/shift/b2 blocks
    out = pl.pallas_call(
        _apply_kernel,
        out_shape=jax.ShapeDtypeStruct((n, o_dim), out_dtype),
        grid_spec=pltpu.PrefetchScalarGridSpec(
            num_scalar_prefetch=0,
            grid=(num_tiles,),
            in_specs=[
                pl.BlockSpec((tile_n, h_dim), lambda t: (t, 0)),   # cached h, tiled
                pl.BlockSpec((1, h_dim), lambda t: (0, 0)),        # BN scale
                pl.BlockSpec((1, h_dim), lambda t: (0, 0)),        # BN shift
                pl.BlockSpec((h_dim, o_dim), lambda t: (0, 0)),    # W2^T bf16, resident
                pl.BlockSpec((1, o_dim), lambda t: (0, 0)),        # b2
            ],
            out_specs=pl.BlockSpec((tile_n, o_dim), lambda t: (t, 0)),
        ),
        compiler_params=pltpu.CompilerParams(
            dimension_semantics=("parallel",),                     # megacore / v7x 2nd TC
            vmem_limit_bytes=_vmem_limit(apply_est),
        ),
        cost_estimate=apply_cost,
    )(h_bf, scale, shift, w2_bf, b22)

    return out


def reference(x, w1_t, gamma, beta, w2_t, b2):
    h = x @ w1_t
    mean = jnp.mean(h, axis=0, keepdims=True)
    var = jnp.mean((h - mean) ** 2, axis=0, keepdims=True)
    h = (h - mean) / jnp.sqrt(var + _BN_EPS) * gamma.reshape(1, -1) + beta.reshape(1, -1)
    h = jnp.maximum(h, 0.0)
    return h @ w2_t + b2.reshape(1, -1)


if __name__ == "__main__":
    # Small shapes consistent with the module (input -> hidden -> output).
    # batch=120 with block_n=32 -> 4 batch tiles including a partial last tile,
    # exercising the tiled BN accumulation and the stats row mask.
    batch, input_dim, hidden_dim, output_dim = 120, 256, 128, 256

    key = jax.random.PRNGKey(0)
    kx, k1, k2, kb = jax.random.split(key, 4)

    x = jax.random.normal(kx, (batch, input_dim), dtype=jnp.float32)

    # PyTorch-style uniform init; linear weights stored pre-transposed as (in, out).
    bound1 = 1.0 / (input_dim ** 0.5)
    w1_t = jax.random.uniform(k1, (input_dim, hidden_dim), jnp.float32, -bound1, bound1)
    gamma = jnp.ones((hidden_dim,), jnp.float32)    # BatchNorm1d weight
    beta = jnp.zeros((hidden_dim,), jnp.float32)    # BatchNorm1d bias
    bound2 = 1.0 / (hidden_dim ** 0.5)
    w2_t = jax.random.uniform(k2, (hidden_dim, output_dim), jnp.float32, -bound2, bound2)
    b2 = jax.random.uniform(kb, (output_dim,), jnp.float32, -bound2, bound2)

    # Production default is block_n=512; the small value here is only to exercise
    # multi-tile accumulation at demo scale.
    out = prediction_mlp(x, w1_t, gamma, beta, w2_t, b2, block_n=32)
    out = jax.block_until_ready(out)

    ref = reference(x, w1_t, gamma, beta, w2_t, b2)
    assert out.shape == (batch, output_dim)
    max_err = float(jnp.max(jnp.abs(out - ref)))
    # bf16 matmul operands / bf16 h cache (f32 accumulation) vs f32 reference.
    assert jnp.allclose(out, ref, atol=5e-2, rtol=5e-2), \
        f"mismatch vs reference (max abs err {max_err})"

    print("KERNEL_OK")
</pallas_src>

<mosaic_0001>
module attributes {stable_mosaic.version = 11 : i64} {
  func.func @_stats_kernel(%arg0: i32, %arg1: memref<32x256xf32, #tpu.memory_space<vmem>>, %arg2: memref<256x128xbf16, #tpu.memory_space<vmem>>, %arg3: memref<1x128xf32, #tpu.memory_space<vmem>>, %arg4: memref<1x128xf32, #tpu.memory_space<vmem>>, %arg5: memref<32x128xbf16, #tpu.memory_space<vmem>>, %arg6: memref<1x128xf32, #tpu.memory_space<vmem>>, %arg7: memref<1x128xf32, #tpu.memory_space<vmem>>, %arg8: memref<8x128xf32, #tpu.memory_space<vmem>>, %arg9: memref<8x128xf32, #tpu.memory_space<vmem>>) attributes {dimension_semantics = [#tpu.dimension_semantics<arbitrary>], iteration_bounds = array<i64: 4>, scalar_prefetch = 0 : i64, scratch_operands = 2 : i64, tpu.core_type = #tpu.core_type<tc>, window_params = [{transform_indices = @transform_0, window_bounds = array<i64: 32, 256>}, {pipeline_mode = #tpu.pipeline_mode<synchronous>, transform_indices = @transform_1, window_bounds = array<i64: 256, 128>}, {pipeline_mode = #tpu.pipeline_mode<synchronous>, transform_indices = @transform_2, window_bounds = array<i64: 1, 128>}, {pipeline_mode = #tpu.pipeline_mode<synchronous>, transform_indices = @transform_3, window_bounds = array<i64: 1, 128>}, {transform_indices = @transform_4, window_bounds = array<i64: 32, 128>}, {pipeline_mode = #tpu.pipeline_mode<synchronous>, transform_indices = @transform_5, window_bounds = array<i64: 1, 128>}, {pipeline_mode = #tpu.pipeline_mode<synchronous>, transform_indices = @transform_6, window_bounds = array<i64: 1, 128>}]} {
    %c0_i32 = arith.constant 0 : i32
    %0 = arith.cmpi eq, %arg0, %c0_i32 : i32
    %1 = arith.extui %0 : i1 to i32
    %c0_i32_0 = arith.constant 0 : i32
    %2 = arith.cmpi ne, %1, %c0_i32_0 : i32
    scf.if %2 {
      %cst_18 = arith.constant 0.000000e+00 : f32
      %32 = vector.broadcast %cst_18 : f32 to vector<8x128xf32>
      %c0_19 = arith.constant 0 : index
      %c0_20 = arith.constant 0 : index
      %33 = vector.load %arg8[%c0_19, %c0_20] : memref<8x128xf32, #tpu.memory_space<vmem>>, vector<8x128xf32>
      tpu.vector_store %arg8[%c0_19, %c0_20], %32 {strides = array<i32>} : memref<8x128xf32, #tpu.memory_space<vmem>>, vector<8x128xf32>,
      %cst_21 = arith.constant 0.000000e+00 : f32
      %34 = vector.broadcast %cst_21 : f32 to vector<8x128xf32>
      %c0_22 = arith.constant 0 : index
      %c0_23 = arith.constant 0 : index
      %35 = vector.load %arg9[%c0_22, %c0_23] : memref<8x128xf32, #tpu.memory_space<vmem>>, vector<8x128xf32>
      tpu.vector_store %arg9[%c0_22, %c0_23], %34 {strides = array<i32>} : memref<8x128xf32, #tpu.memory_space<vmem>>, vector<8x128xf32>,
    } else {
    }
    %c0 = arith.constant 0 : index
    %c0_1 = arith.constant 0 : index
    %3 = vector.load %arg1[%c0, %c0_1] : memref<32x256xf32, #tpu.memory_space<vmem>>, vector<32x256xf32>
    %4 = arith.truncf %3 : vector<32x256xf32> to vector<32x256xbf16>
    %c0_2 = arith.constant 0 : index
    %c0_3 = arith.constant 0 : index
    %5 = vector.load %arg2[%c0_2, %c0_3] : memref<256x128xbf16, #tpu.memory_space<vmem>>, vector<256x128xbf16>
    %cst = arith.constant dense<0.000000e+00> : vector<32x128xf32>
    %6 = tpu.matmul %4, %5, %cst {dimension_numbers = #tpu.dot_dimension_numbers<[1], [0], [0], [1], [0, 0, 1, 1], [], []>} : vector<32x256xbf16>, vector<256x128xbf16>, vector<32x128xf32> -> vector<32x128xf32>
    %7 = arith.truncf %6 : vector<32x128xf32> to vector<32x128xbf16>
    %c0_4 = arith.constant 0 : index
    %c0_5 = arith.constant 0 : index
    %8 = vector.load %arg5[%c0_4, %c0_5] : memref<32x128xbf16, #tpu.memory_space<vmem>>, vector<32x128xbf16>
    tpu.vector_store %arg5[%c0_4, %c0_5], %7 {strides = array<i32>} : memref<32x128xbf16, #tpu.memory_space<vmem>>, vector<32x128xbf16>,
    %9 = tpu.iota {dimensions = array<i32: 0>} : vector<32x1xi32>
    %c32_i32 = arith.constant 32 : i32
    %10 = arith.muli %arg0, %c32_i32 : i32
    %11 = vector.broadcast %10 : i32 to vector<32x1xi32>
    %12 = arith.addi %9, %11 : vector<32x1xi32>
    %c120_i32 = arith.constant 120 : i32
    %13 = vector.broadcast %c120_i32 : i32 to vector<32x1xi32>
    %14 = arith.cmpi slt, %12, %13 : vector<32x1xi32>
    %cst_6 = arith.constant 0.000000e+00 : f32
    %15 = vector.shape_cast %14 : vector<32x1xi1> to vector<32x1xi1>
    %16 = vector.broadcast %15 : vector<32x1xi1> to vector<32x128xi1>
    %17 = vector.broadcast %cst_6 : f32 to vector<32x128xf32>
    %18 = arith.select %16, %6, %17 : vector<32x128xi1>, vector<32x128xf32>
    %19 = vector.shape_cast %18 : vector<32x128xf32> to vector<4x8x128xf32>
    %c0_7 = arith.constant 0 : index
    %c0_8 = arith.constant 0 : index
    %20 = vector.load %arg8[%c0_7, %c0_8] : memref<8x128xf32, #tpu.memory_space<vmem>>, vector<8x128xf32>
    %cst_9 = arith.constant dense<0.000000e+00> : vector<8x128xf32>
    %21 = vector.multi_reduction <add>, %19, %cst_9 [0] : vector<4x8x128xf32> to vector<8x128xf32>
    %22 = arith.addf %20, %21 : vector<8x128xf32>
    %c0_10 = arith.constant 0 : index
    %c0_11 = arith.constant 0 : index
    %23 = vector.load %arg8[%c0_10, %c0_11] : memref<8x128xf32, #tpu.memory_space<vmem>>, vector<8x128xf32>
    tpu.vector_store %arg8[%c0_10, %c0_11], %22 {strides = array<i32>} : memref<8x128xf32, #tpu.memory_space<vmem>>, vector<8x128xf32>,
    %c0_12 = arith.constant 0 : index
    %c0_13 = arith.constant 0 : index
    %24 = vector.load %arg9[%c0_12, %c0_13] : memref<8x128xf32, #tpu.memory_space<vmem>>, vector<8x128xf32>
    %25 = arith.mulf %19, %19 : vector<4x8x128xf32>
    %cst_14 = arith.constant dense<0.000000e+00> : vector<8x128xf32>
    %26 = vector.multi_reduction <add>, %25, %cst_14 [0] : vector<4x8x128xf32> to vector<8x128xf32>
    %27 = arith.addf %24, %26 : vector<8x128xf32>
    %c0_15 = arith.constant 0 : index
    %c0_16 = arith.constant 0 : index
    %28 = vector.load %arg9[%c0_15, %c0_16] : memref<8x128xf32, #tpu.memory_space<vmem>>, vector<8x128xf32>
    tpu.vector_store %arg9[%c0_15, %c0_16], %27 {strides = array<i32>} : memref<8x128xf32, #tpu.memory_space<vmem>>, vector<8x128xf32>,
    %c3_i32 = arith.constant 3 : i32
    %29 = arith.cmpi eq, %arg0, %c3_i32 : i32
    %30 = arith.extui %29 : i1 to i32
    %c0_i32_17 = arith.constant 0 : i32
    %31 = arith.cmpi ne, %30, %c0_i32_17 : i32
    scf.if %31 {
      %c0_18 = arith.constant 0 : index
      %c0_19 = arith.constant 0 : index
      %32 = vector.load %arg8[%c0_18, %c0_19] : memref<8x128xf32, #tpu.memory_space<vmem>>, vector<8x128xf32>
      %cst_20 = arith.constant dense<0.000000e+00> : vector<128xf32>
      %33 = vector.multi_reduction <add>, %32, %cst_20 [0] : vector<8x128xf32> to vector<128xf32>
      %34 = vector.shape_cast %33 : vector<128xf32> to vector<1x128xf32>
      %cst_21 = arith.constant 0.00833333377 : f32
      %35 = vector.broadcast %cst_21 : f32 to vector<1x128xf32>
      %36 = arith.mulf %34, %35 : vector<1x128xf32>
      %c0_22 = arith.constant 0 : index
      %c0_23 = arith.constant 0 : index
      %37 = vector.load %arg9[%c0_22, %c0_23] : memref<8x128xf32, #tpu.memory_space<vmem>>, vector<8x128xf32>
      %cst_24 = arith.constant dense<0.000000e+00> : vector<128xf32>
      %38 = vector.multi_reduction <add>, %37, %cst_24 [0] : vector<8x128xf32> to vector<128xf32>
      %39 = vector.shape_cast %38 : vector<128xf32> to vector<1x128xf32>
      %cst_25 = arith.constant 0.00833333377 : f32
      %40 = vector.broadcast %cst_25 : f32 to vector<1x128xf32>
      %41 = arith.mulf %39, %40 : vector<1x128xf32>
      %42 = arith.mulf %36, %36 : vector<1x128xf32>
      %43 = arith.subf %41, %42 : vector<1x128xf32>
      %cst_26 = arith.constant 0.000000e+00 : f32
      %44 = vector.broadcast %cst_26 : f32 to vector<1x128xf32>
      %45 = arith.maximumf %43, %44 : vector<1x128xf32>
      %c0_27 = arith.constant 0 : index
      %c0_28 = arith.constant 0 : index
      %46 = vector.load %arg3[%c0_27, %c0_28] : memref<1x128xf32, #tpu.memory_space<vmem>>, vector<1x128xf32>
      %cst_29 = arith.constant 9.99999974E-6 : f32
      %47 = vector.broadcast %cst_29 : f32 to vector<1x128xf32>
      %48 = arith.addf %45, %47 : vector<1x128xf32>
      %49 = math.rsqrt %48 : vector<1x128xf32>
      %50 = arith.mulf %46, %49 : vector<1x128xf32>
      %c0_30 = arith.constant 0 : index
      %c0_31 = arith.constant 0 : index
      %51 = vector.load %arg6[%c0_30, %c0_31] : memref<1x128xf32, #tpu.memory_space<vmem>>, vector<1x128xf32>
      tpu.vector_store %arg6[%c0_30, %c0_31], %50 {strides = array<i32>} : memref<1x128xf32, #tpu.memory_space<vmem>>, vector<1x128xf32>,
      %c0_32 = arith.constant 0 : index
      %c0_33 = arith.constant 0 : index
      %52 = vector.load %arg4[%c0_32, %c0_33] : memref<1x128xf32, #tpu.memory_space<vmem>>, vector<1x128xf32>
      %53 = arith.mulf %36, %50 : vector<1x128xf32>
      %54 = arith.subf %52, %53 : vector<1x128xf32>
      %c0_34 = arith.constant 0 : index
      %c0_35 = arith.constant 0 : index
      %55 = vector.load %arg7[%c0_34, %c0_35] : memref<1x128xf32, #tpu.memory_space<vmem>>, vector<1x128xf32>
      tpu.vector_store %arg7[%c0_34, %c0_35], %54 {strides = array<i32>} : memref<1x128xf32, #tpu.memory_space<vmem>>, vector<1x128xf32>,
    } else {
    }
    return
  }
  func.func @transform_0(%arg0: i32) -> (i32, i32) {
    %c0_i32 = arith.constant 0 : i32
    %c0_i32_0 = arith.constant 0 : i32
    return %arg0, %c0_i32 : i32, i32
  }
  func.func @transform_1(%arg0: i32) -> (i32, i32) {
    %c0_i32 = arith.constant 0 : i32
    %c0_i32_0 = arith.constant 0 : i32
    %c0_i32_1 = arith.constant 0 : i32
    return %c0_i32, %c0_i32_0 : i32, i32
  }
  func.func @transform_2(%arg0: i32) -> (i32, i32) {
    %c0_i32 = arith.constant 0 : i32
    %c0_i32_0 = arith.constant 0 : i32
    %c0_i32_1 = arith.constant 0 : i32
    return %c0_i32, %c0_i32_0 : i32, i32
  }
  func.func @transform_3(%arg0: i32) -> (i32, i32) {
    %c0_i32 = arith.constant 0 : i32
    %c0_i32_0 = arith.constant 0 : i32
    %c0_i32_1 = arith.constant 0 : i32
    return %c0_i32, %c0_i32_0 : i32, i32
  }
  func.func @transform_4(%arg0: i32) -> (i32, i32) {
    %c0_i32 = arith.constant 0 : i32
    %c0_i32_0 = arith.constant 0 : i32
    return %arg0, %c0_i32 : i32, i32
  }
  func.func @transform_5(%arg0: i32) -> (i32, i32) {
    %c0_i32 = arith.constant 0 : i32
    %c0_i32_0 = arith.constant 0 : i32
    %c0_i32_1 = arith.constant 0 : i32
    return %c0_i32, %c0_i32_0 : i32, i32
  }
  func.func @transform_6(%arg0: i32) -> (i32, i32) {
    %c0_i32 = arith.constant 0 : i32
    %c0_i32_0 = arith.constant 0 : i32
    %c0_i32_1 = arith.constant 0 : i32
    return %c0_i32, %c0_i32_0 : i32, i32
  }
}

</mosaic_0001>

<llo_original>
// kernel: tpu_custom_call.1
$region0: #{tpu_custom_call.1}
  #allocation0 [shape = 'u32[]', space=smem, size = 0x4, offset = 0x4, fixed_abs, tag = 'smem constant byte address 0x4 - core index']
  #allocation1 [shape = 'u32[144,128]{1,0:T(1,128)}', space=vmem, size = 0x12000, scoped, tag = 'internal scratch']
  #allocation2 [shape = 'f32[8,128]{1,0:T(8,128)}', space=vmem, size = 0x1000, scoped, tag = 'scratch operand']
  #allocation3 [shape = 'f32[8,128]{1,0:T(8,128)}', space=vmem, size = 0x1000, scoped, tag = 'scratch operand']
  %s0 = inlined_call_operand.hbm [shape: f32[120,256], index: 0, kind: input, shape index: {}]
  %s1 = inlined_call_operand.hbm [shape: bf16[256,128], index: 1, kind: input, shape index: {}]
  %s2 = inlined_call_operand.vmem [shape: f32[1,128], index: 2, kind: input, shape index: {}]
  %s3 = inlined_call_operand.vmem [shape: f32[1,128], index: 3, kind: input, shape index: {}]
  %s4 = inlined_call_operand.hbm [shape: bf16[120,128], index: 4, kind: output, shape index: {0}]
  %s5 = inlined_call_operand.hbm [shape: f32[1,128], index: 5, kind: output, shape index: {1}]
  %s6 = inlined_call_operand.hbm [shape: f32[1,128], index: 6, kind: output, shape index: {2}]
  %7 = xla_tuple %s4, %s5, %s6
  %s8 = sld [smem:[#allocation0]]
  $region81: #{tpu_custom_call.1} parent=0
    _
  %s10 = ssub.s32 1, %s8
  %s11 = scalar_select 0, %s10, %s8
  $region1: #{tpu_custom_call.1} parent=0
    #allocation4 [shape = 'u8[65536]{0}', space=vmem, size = 0x10000, scoped, tag = 'input window, operand 0']
    #allocation5 [shape = 's32[2]{0}', space=sflag, size = 0x8, scoped, tag = 'scoped memory for tpu_custom_call.1']
    #allocation6 [shape = 's32[2]{0}', space=sflag, size = 0x8, scoped, tag = 'scoped memory for tpu_custom_call.1']
    #allocation7 [shape = 'u8[65536]{0}', space=vmem, size = 0x10000, scoped, tag = 'input window, operand 1, single buffered']
    #allocation8 [shape = 's32[1]{0}', space=sflag, size = 0x4, scoped, tag = 'scoped memory for tpu_custom_call.1']
    #allocation9 [shape = 'u8[16384]{0}', space=vmem, size = 0x4000, scoped, tag = 'output window, operand 0']
    #allocation10 [shape = 'u8[512]{0}', space=vmem, size = 0x400, scoped, tag = 'output window, operand 1, single buffered']
    #allocation11 [shape = 's32[1]{0}', space=sflag, size = 0x4, scoped, tag = 'scoped memory for tpu_custom_call.1']
    #allocation12 [shape = 'u8[512]{0}', space=vmem, size = 0x400, scoped, tag = 'output window, operand 2, single buffered']
    %12 = vsyncpa [#allocation5], 0
    %s13 = scalar_lea.sflag [#allocation5], 1
    %14 = vsyncpa %s13, 0
    %15 = vsyncpa [#allocation8], 0
    %16 = vsyncpa [#allocation6], 0
    %s17 = scalar_lea.sflag [#allocation6], 1
    %18 = vsyncpa %s17, 0
    %19 = vsyncpa [#allocation11], 0
    loop: start=0, step=1, limit=6
    $region2: #{tpu_custom_call.1} parent=1 // loop_pre_header
      _
    $region3: #{tpu_custom_call.1} parent=1 // loop_header
      %s21 = sphi 0, %s25
      %p22 = scmp.ge.s32.totalorder %s21, 6
      %s31 = sphi 0, %s33
      %s34 = sphi 0, %s31
      %s35 = sphi 0, %s34
      %s51 = sphi 0, %s35
      %s55 = sphi 0, %s55
      %s57 = sphi 0, %s55
      %s58 = sphi 0, %s57
      %s72 = sphi 0, %s58
      %s76 = sphi 0, %s76
      %s78 = sphi 0, %s76
      %s79 = sphi 0, %s78
      %s93 = sphi 0, %s79
      %s97 = sphi 0, %s97
      %s99 = sphi 0, %s97
      %s100 = sphi 0, %s99
      %s114 = sphi 0, %s100
      %s120 = sphi 0, %s122
      %s123 = sphi 0, %s120
      %s124 = sphi 0, %s123
      %s140 = sphi 0, %s124
      %s144 = sphi 0, %s144
      %s146 = sphi 0, %s144
      %s147 = sphi 0, %s146
      %s161 = sphi 0, %s147
      %s165 = sphi 0, %s165
      %s167 = sphi 0, %s165
      %s168 = sphi 0, %s167
      %s182 = sphi 0, %s168
    $region4: #{tpu_custom_call.1} parent=1 // loop_header_branch
      %24 = sbr.rel (%p22) target = $region8
    $region5: #{tpu_custom_call.1} parent=1 // loop_body
      %s26 = ssub.s32 %s21, 1
      %s27 = ssub.s32 %s21, 2
      %s28 = sadd.s32 %s21, 1
      %s29 = ssub.s32 %s21, %s28
      %p30 = scmp.eq.s32.totalorder %s29, 0
      %s32 = sadd.s32 %s31, 1
      %s33 = scalar_select %p30, %s31, %s32
      %p36 = pneg %p30
      %p37 = scmp.eq.s32.totalorder %s21, 3
      %p38 = por %p36, %p37
      %p39 = scmp.ne.s32.totalorder %s31, %s34
      %p40 = scmp.eq.s32.totalorder %s21, 0
      %p41 = por %p39, %p40
      %p42 = scmp.ne.s32.totalorder %s31, %s34
      %p43 = scmp.eq.s32.totalorder %s26, 3
      %p44 = por %p42, %p43
      %p45 = scmp.ne.s32.totalorder %s34, %s35
      %p46 = scmp.eq.s32.totalorder %s26, 0
      %p47 = por %p45, %p46
      %p48 = scmp.ne.s32.totalorder %s34, %s35
      %p49 = scmp.eq.s32.totalorder %s27, 3
      %p50 = por %p48, %p49
      %p52 = scmp.ne.s32.totalorder %s35, %s51
      %p53 = scmp.eq.s32.totalorder %s27, 0
      %p54 = por %p52, %p53
      %s56 = sadd.s32 %s55, 1
      %p59 = scmp.eq.s32.totalorder %s21, 3
      %p60 = scmp.ne.s32.totalorder %s55, %s57
      %p61 = scmp.eq.s32.totalorder %s21, 0
      %p62 = por %p60, %p61
      %p63 = scmp.ne.s32.totalorder %s55, %s57
      %p64 = scmp.eq.s32.totalorder %s26, 3
      %p65 = por %p63, %p64
      %p66 = scmp.ne.s32.totalorder %s57, %s58
      %p67 = scmp.eq.s32.totalorder %s26, 0
      %p68 = por %p66, %p67
      %p69 = scmp.ne.s32.totalorder %s57, %s58
      %p70 = scmp.eq.s32.totalorder %s27, 3
      %p71 = por %p69, %p70
      %p73 = scmp.ne.s32.totalorder %s58, %s72
      %p74 = scmp.eq.s32.totalorder %s27, 0
      %p75 = por %p73, %p74
      %s77 = sadd.s32 %s76, 1
      %p80 = scmp.eq.s32.totalorder %s21, 3
      %p81 = scmp.ne.s32.totalorder %s76, %s78
      %p82 = scmp.eq.s32.totalorder %s21, 0
      %p83 = por %p81, %p82
      %p84 = scmp.ne.s32.totalorder %s76, %s78
      %p85 = scmp.eq.s32.totalorder %s26, 3
      %p86 = por %p84, %p85
      %p87 = scmp.ne.s32.totalorder %s78, %s79
      %p88 = scmp.eq.s32.totalorder %s26, 0
      %p89 = por %p87, %p88
      %p90 = scmp.ne.s32.totalorder %s78, %s79
      %p91 = scmp.eq.s32.totalorder %s27, 3
      %p92 = por %p90, %p91
      %p94 = scmp.ne.s32.totalorder %s79, %s93
      %p95 = scmp.eq.s32.totalorder %s27, 0
      %p96 = por %p94, %p95
      %s98 = sadd.s32 %s97, 1
      %p101 = scmp.eq.s32.totalorder %s21, 3
      %p102 = scmp.ne.s32.totalorder %s97, %s99
      %p103 = scmp.eq.s32.totalorder %s21, 0
      %p104 = por %p102, %p103
      %p105 = scmp.ne.s32.totalorder %s97, %s99
      %p106 = scmp.eq.s32.totalorder %s26, 3
      %p107 = por %p105, %p106
      %p108 = scmp.ne.s32.totalorder %s99, %s100
      %p109 = scmp.eq.s32.totalorder %s26, 0
      %p110 = por %p108, %p109
      %p111 = scmp.ne.s32.totalorder %s99, %s100
      %p112 = scmp.eq.s32.totalorder %s27, 3
      %p113 = por %p111, %p112
      %p115 = scmp.ne.s32.totalorder %s100, %s114
      %p116 = scmp.eq.s32.totalorder %s27, 0
      %p117 = por %p115, %p116
      %s118 = ssub.s32 %s21, %s28
      %p119 = scmp.eq.s32.totalorder %s118, 0
      %s121 = sadd.s32 %s120, 1
      %s122 = scalar_select %p119, %s120, %s121
      %p125 = pneg %p119
      %p126 = scmp.eq.s32.totalorder %s21, 3
      %p127 = por %p125, %p126
      %p128 = scmp.ne.s32.totalorder %s120, %s123
      %p129 = scmp.eq.s32.totalorder %s21, 0
      %p130 = por %p128, %p129
      %p131 = scmp.ne.s32.totalorder %s120, %s123
      %p132 = scmp.eq.s32.totalorder %s26, 3
      %p133 = por %p131, %p132
      %p134 = scmp.ne.s32.totalorder %s123, %s124
      %p135 = scmp.eq.s32.totalorder %s26, 0
      %p136 = por %p134, %p135
      %p137 = scmp.ne.s32.totalorder %s123, %s124
      %p138 = scmp.eq.s32.totalorder %s27, 3
      %p139 = por %p137, %p138
      %p141 = scmp.ne.s32.totalorder %s124, %s140
      %p142 = scmp.eq.s32.totalorder %s27, 0
      %p143 = por %p141, %p142
      %s145 = sadd.s32 %s144, 1
      %p148 = scmp.eq.s32.totalorder %s21, 3
      %p149 = scmp.ne.s32.totalorder %s144, %s146
      %p150 = scmp.eq.s32.totalorder %s21, 0
      %p151 = por %p149, %p150
      %p152 = scmp.ne.s32.totalorder %s144, %s146
      %p153 = scmp.eq.s32.totalorder %s26, 3
      %p154 = por %p152, %p153
      %p155 = scmp.ne.s32.totalorder %s146, %s147
      %p156 = scmp.eq.s32.totalorder %s26, 0
      %p157 = por %p155, %p156
      %p158 = scmp.ne.s32.totalorder %s146, %s147
      %p159 = scmp.eq.s32.totalorder %s27, 3
      %p160 = por %p158, %p159
      %p162 = scmp.ne.s32.totalorder %s147, %s161
      %p163 = scmp.eq.s32.totalorder %s27, 0
      %p164 = por %p162, %p163
      %s166 = sadd.s32 %s165, 1
      %p169 = scmp.eq.s32.totalorder %s21, 3
      %p170 = scmp.ne.s32.totalorder %s165, %s167
      %p171 = scmp.eq.s32.totalorder %s21, 0
      %p172 = por %p170, %p171
      %p173 = scmp.ne.s32.totalorder %s165, %s167
      %p174 = scmp.eq.s32.totalorder %s26, 3
      %p175 = por %p173, %p174
      %p176 = scmp.ne.s32.totalorder %s167, %s168
      %p177 = scmp.eq.s32.totalorder %s26, 0
      %p178 = por %p176, %p177
      %p179 = scmp.ne.s32.totalorder %s167, %s168
      %p180 = scmp.eq.s32.totalorder %s27, 3
      %p181 = por %p179, %p180
      %p183 = scmp.ne.s32.totalorder %s168, %s182
      %p184 = scmp.eq.s32.totalorder %s27, 0
      %p185 = por %p183, %p184
      %p186 = scmp.le.s32.totalorder 1, %s21
      %p187 = scmp.lt.s32.totalorder %s21, 5
      %p188 = pnand %p186, %p187
      %p189 = pneg %p188
      // Predicated region
      $region9: #{tpu_custom_call.1} parent=5 // pred_check
        _
      $region10: #{tpu_custom_call.1} parent=5 // pred_check_branch
        %191 = sbr.rel (%p188) target = $region12
      $region11: #{tpu_custom_call.1} parent=5 // pred_region
        %s192 = ssub.s32 %s21, 1
        // Predicated region
        $region13: #{tpu_custom_call.1} parent=11 // pred_check
          %p193 = pneg %p68
        $region14: #{tpu_custom_call.1} parent=11 // pred_check_branch
          %195 = sbr.rel (%p193) target = $region16
        $region15: #{tpu_custom_call.1} parent=11 // pred_region
          %s197 = ssub.s32 2048, 2048
          %198 = vsyncadd [#allocation8], %s197
          %s199 = sshll.u32 [#allocation7], 4
          %s200 = int_to_ptr.vmem [resolvable:$true] %s199
          %205 = dma.hbm_to_vmem [thread:$0]  %s1, 2048, %s200, [#allocation8], 64, 64, 4
        $region16: #{tpu_custom_call.1} parent=11 // pred_fallthru
          _
        // Predicated region
        $region17: #{tpu_custom_call.1} parent=11 // pred_check
          %p206 = pneg %p89
        $region18: #{tpu_custom_call.1} parent=11 // pred_check_branch
          %208 = sbr.rel (%p206) target = $region20
        $region19: #{tpu_custom_call.1} parent=11 // pred_region
          _
        $region20: #{tpu_custom_call.1} parent=11 // pred_fallthru
          _
        // Predicated region
        $region21: #{tpu_custom_call.1} parent=11 // pred_check
          %p209 = pneg %p110
        $region22: #{tpu_custom_call.1} parent=11 // pred_check_branch
          %211 = sbr.rel (%p209) target = $region24
        $region23: #{tpu_custom_call.1} parent=11 // pred_region
          _
        $region24: #{tpu_custom_call.1} parent=11 // pred_fallthru
          _
      $region12: #{tpu_custom_call.1} parent=5 // pred_fallthru
        _
      %p212 = scmp.lt.s32.totalorder %s21, 4
      // Predicated region
      $region25: #{tpu_custom_call.1} parent=5 // pred_check
        %p213 = pneg %p212
      $region26: #{tpu_custom_call.1} parent=5 // pred_check_branch
        %215 = sbr.rel (%p213) target = $region28
      $region27: #{tpu_custom_call.1} parent=5 // pred_region
        // Predicated region
        $region29: #{tpu_custom_call.1} parent=27 // pred_check
          %p216 = pneg %p41
        $region30: #{tpu_custom_call.1} parent=27 // pred_check_branch
          %218 = sbr.rel (%p216) target = $region32
        $region31: #{tpu_custom_call.1} parent=27 // pred_region
          %s219 = sand.u32 %s31, 1
          %s220 = scalar_lea.sflag [#allocation5], %s219
          %s221 = sand.u32 %s31, 1
          %s222 = smul.addr %s221, 64
          %s223 = scalar_lea.vmem [#allocation4], %s222
          %s224 = smul.u32 4, %s21
          %s225 = ssub.s32 15, %s224
          %p226 = scmp.lt.s32.totalorder %s225, 4
          %s227 = scalar_select %p226, %s225, 4
          %s228 = smul.u32 128, %s227
          %s229 = smul.u32 %s228, 2
          %s231 = ssub.s32 1024, %s229
          %232 = vsyncadd %s220, %s231
          %p233 = scmp.ne.s32.totalorder 0, %s229
          %s234 = smul.addr %s224, 2
          %s235 = smul.addr %s234, 128
          %s236 = scalar_lea.hbm %s0, %s235
          %s237 = smul.u32 16, %s227
          %s238 = sshll.u32 %s223, 4
          %s239 = int_to_ptr.vmem [resolvable:$true] %s238
          %s240 = sshll.u32 %s237, 4
          %244 = dma.hbm_to_vmem [thread:$0]  (%p233), %s236, %s240, %s239, %s220, 256, 256, 16
        $region32: #{tpu_custom_call.1} parent=27 // pred_fallthru
          _
      $region28: #{tpu_custom_call.1} parent=5 // pred_fallthru
        _
      %p245 = scmp.le.s32.totalorder 1, %s21
      %p246 = scmp.lt.s32.totalorder %s21, 5
      %p247 = pnand %p245, %p246
      %p248 = pneg %p247
      // Predicated region
      $region33: #{tpu_custom_call.1} parent=5 // pred_check
        _
      $region34: #{tpu_custom_call.1} parent=5 // pred_check_branch
        %250 = sbr.rel (%p247) target = $region36
      $region35: #{tpu_custom_call.1} parent=5 // pred_region
        %s251 = ssub.s32 %s21, 1
        %s252 = sand.u32 %s34, 1
        %s253 = scalar_lea.sflag [#allocation5], %s252
        %s254 = sand.u32 %s34, 1
        %s255 = smul.addr %s254, 64
        %s256 = scalar_lea.vmem [#allocation4], %s255
        // Predicated region
        $region37: #{tpu_custom_call.1} parent=35 // pred_check
          %p257 = pneg %p47
        $region38: #{tpu_custom_call.1} parent=35 // pred_check_branch
          %259 = sbr.rel (%p257) target = $region40
        $region39: #{tpu_custom_call.1} parent=35 // pred_region
          %260 = dma.done %s253, 1024
        $region40: #{tpu_custom_call.1} parent=35 // pred_fallthru
          _
        // Predicated region
        $region41: #{tpu_custom_call.1} parent=35 // pred_check
          %p261 = pneg %p68
        $region42: #{tpu_custom_call.1} parent=35 // pred_check_branch
          %263 = sbr.rel (%p261) target = $region44
        $region43: #{tpu_custom_call.1} parent=35 // pred_region
          %264 = dma.done [#allocation8], 2048
        $region44: #{tpu_custom_call.1} parent=35 // pred_fallthru
          _
        %s265 = sand.u32 %s34, 1
        %s266 = scalar_lea.sflag [#allocation5], %s265
        %s267 = sand.u32 %s34, 1
        %s268 = smul.addr %s267, 64
        %s269 = scalar_lea.vmem [#allocation4], %s268
        %p270 = pneg %p47
        %p271 = pneg %p44
        %p272 = pneg %p68
        %p273 = pneg %p65
        %p274 = pneg %p89
        %p275 = pneg %p86
        %p276 = pneg %p110
        %p277 = pneg %p107
        %p278 = pneg %p136
        %p279 = pneg %p133
        %s280 = sand.u32 %s123, 1
        %s281 = scalar_lea.sflag [#allocation6], %s280
        %s282 = sand.u32 %s123, 1
        %s283 = smul.addr %s282, 16
        %s284 = scalar_lea.vmem [#allocation9], %s283
        %p285 = pneg %p157
        %p286 = pneg %p154
        %p287 = pneg %p178
        %p288 = pneg %p175
        %s289 = smul.u32 4, %s26
        %s290 = ssub.s32 15, %s289
        %p291 = scmp.lt.s32.totalorder %s290, 4
        %s292 = scalar_select %p291, %s290, 4
        %s293 = smul.u32 128, %s292
        %s294 = smul.u32 %s293, 2
        %s295 = smul.u32 4, %s26
        %s296 = ssub.s32 15, %s295
        %p297 = scmp.lt.s32.totalorder %s296, 4
        %s298 = scalar_select %p297, %s296, 4
        %s299 = smul.u32 64, %s298
        %p301 = scmp.eq.s32.totalorder %s26, 0
        // Predicated region
        $region45: #{tpu_custom_call.1} parent=35 // pred_check
          %p302 = pneg %p301
        $region46: #{tpu_custom_call.1} parent=35 // pred_check_branch
          %304 = sbr.rel (%p302) target = $region48
        $region47: #{tpu_custom_call.1} parent=35 // pred_region
          %305 = vst [vmem:[#allocation2] sm:$0xff] 0.0
          %306 = vst [vmem:[#allocation3] sm:$0xff] 0.0
        $region48: #{tpu_custom_call.1} parent=35 // pred_fallthru
          _
        %v307 = vld [vmem:[%s256] sm:$0xff]
        %v308 = vld [vmem:[%s256 + $0x8] sm:$0xff]
        %v309 = vld [vmem:[%s256 + $0x10] sm:$0xff]
        %v310 = vld [vmem:[%s256 + $0x18] sm:$0xff]
        %v311 = vld [vmem:[%s256 + $0x20] sm:$0xff]
        %v312 = vld [vmem:[%s256 + $0x28] sm:$0xff]
        %v313 = vld [vmem:[%s256 + $0x30] sm:$0xff]
        %v314 = vld [vmem:[%s256 + $0x38] sm:$0xff]
        %v315 = vpack.c.bf16 %v309, %v307
        %v316 = vpack.c.bf16 %v310, %v308
        %v317 = vpack.c.bf16 %v313, %v311
        %v318 = vpack.c.bf16 %v314, %v312
        %v319 = vld [vmem:[#allocation7] sm:$0xf]
        %v320 = vld [vmem:[#allocation7 + $0x4] sm:$0xf]
        %v321 = vld [vmem:[#allocation7 + $0x8] sm:$0xf]
        %v322 = vld [vmem:[#allocation7 + $0xc] sm:$0xf]
        %v323 = vld [vmem:[#allocation7 + $0x10] sm:$0xf]
        %v324 = vld [vmem:[#allocation7 + $0x14] sm:$0xf]
        %v325 = vld [vmem:[#allocation7 + $0x18] sm:$0xf]
        %v326 = vld [vmem:[#allocation7 + $0x1c] sm:$0xf]
        %v327 = vld [vmem:[#allocation7 + $0x20] sm:$0xf]
        %v328 = vld [vmem:[#allocation7 + $0x24] sm:$0xf]
        %v329 = vld [vmem:[#allocation7 + $0x28] sm:$0xf]
        %v330 = vld [vmem:[#allocation7 + $0x2c] sm:$0xf]
        %v331 = vld [vmem:[#allocation7 + $0x30] sm:$0xf]
        %v332 = vld [vmem:[#allocation7 + $0x34] sm:$0xf]
        %v333 = vld [vmem:[#allocation7 + $0x38] sm:$0xf]
        %v334 = vld [vmem:[#allocation7 + $0x3c] sm:$0xf]
        %v335 = vld [vmem:[#allocation7 + $0x40] sm:$0xf]
        %v336 = vld [vmem:[#allocation7 + $0x44] sm:$0xf]
        %v337 = vld [vmem:[#allocation7 + $0x48] sm:$0xf]
        %v338 = vld [vmem:[#allocation7 + $0x4c] sm:$0xf]
        %v339 = vld [vmem:[#allocation7 + $0x50] sm:$0xf]
        %v340 = vld [vmem:[#allocation7 + $0x54] sm:$0xf]
        %v341 = vld [vmem:[#allocation7 + $0x58] sm:$0xf]
        %v342 = vld [vmem:[#allocation7 + $0x5c] sm:$0xf]
        %v343 = vld [vmem:[#allocation7 + $0x60] sm:$0xf]
        %v344 = vld [vmem:[#allocation7 + $0x64] sm:$0xf]
        %v345 = vld [vmem:[#allocation7 + $0x68] sm:$0xf]
        %v346 = vld [vmem:[#allocation7 + $0x6c] sm:$0xf]
        %v347 = vld [vmem:[#allocation7 + $0x70] sm:$0xf]
        %v348 = vld [vmem:[#allocation7 + $0x74] sm:$0xf]
        %v349 = vld [vmem:[#allocation7 + $0x78] sm:$0xf]
        %v350 = vld [vmem:[#allocation7 + $0x7c] sm:$0xf]
        %v383 = vunpack.c.l.b16 %v319
        %v384 = vunpack.c.l.b16 %v320
        %v385 = vunpack.c.l.b16 %v321
        %v386 = vunpack.c.l.b16 %v322
        %v387 = vunpack.c.l.b16 %v323
        %v388 = vunpack.c.l.b16 %v324
        %v389 = vunpack.c.l.b16 %v325
        %v390 = vunpack.c.l.b16 %v326
        %v391 = vunpack.c.l.b16 %v327
        %v392 = vunpack.c.l.b16 %v328
        %v393 = vunpack.c.l.b16 %v329
        %v394 = vunpack.c.l.b16 %v330
        %v395 = vunpack.c.l.b16 %v331
        %v396 = vunpack.c.l.b16 %v332
        %v397 = vunpack.c.l.b16 %v333
        %v398 = vunpack.c.l.b16 %v334
        %v399 = vunpack.c.l.b16 %v335
        %v400 = vunpack.c.l.b16 %v336
        %v401 = vunpack.c.l.b16 %v337
        %v402 = vunpack.c.l.b16 %v338
        %v403 = vunpack.c.l.b16 %v339
        %v404 = vunpack.c.l.b16 %v340
        %v405 = vunpack.c.l.b16 %v341
        %v406 = vunpack.c.l.b16 %v342
        %v407 = vunpack.c.l.b16 %v343
        %v408 = vunpack.c.l.b16 %v344
        %v409 = vunpack.c.l.b16 %v345
        %v410 = vunpack.c.l.b16 %v346
        %v411 = vunpack.c.l.b16 %v347
        %v412 = vunpack.c.l.b16 %v348
        %v413 = vunpack.c.l.b16 %v349
        %v414 = vunpack.c.l.b16 %v350
        %v415 = vpack.c.b16 %v384, %v383
        %v416 = vpack.c.b16 %v386, %v385
        %v417 = vpack.c.b16 %v388, %v387
        %v418 = vpack.c.b16 %v390, %v389
        %v419 = vpack.c.b16 %v392, %v391
        %v420 = vpack.c.b16 %v394, %v393
        %v421 = vpack.c.b16 %v396, %v395
        %v422 = vpack.c.b16 %v398, %v397
        %v423 = vpack.c.b16 %v400, %v399
        %v424 = vpack.c.b16 %v402, %v401
        %v425 = vpack.c.b16 %v404, %v403
        %v426 = vpack.c.b16 %v406, %v405
        %v427 = vpack.c.b16 %v408, %v407
        %v428 = vpack.c.b16 %v410, %v409
        %v429 = vpack.c.b16 %v412, %v411
        %v430 = vpack.c.b16 %v414, %v413
        %447 = vmatprep.subr.bf16.mxu0 0
        %448 = vmatpush1.bf16.msra.mxu0 %v415
        %449 = vmatprep.subr.bf16.mxu0 0
        %450 = vmatpush1.bf16.msra.mxu0 %v416
        %451 = vmatprep.subr.bf16.mxu0 0
        %452 = vmatpush1.bf16.msra.mxu0 %v417
        %453 = vmatprep.subr.bf16.mxu0 0
        %454 = vmatpush1.bf16.msra.mxu0 %v418
        %455 = vmatprep.subr.bf16.mxu0 0
        %456 = vmatpush1.bf16.msra.mxu0 %v419
        %457 = vmatprep.subr.bf16.mxu0 0
        %458 = vmatpush1.bf16.msra.mxu0 %v420
        %459 = vmatprep.subr.bf16.mxu0 0
        %460 = vmatpush1.bf16.msra.mxu0 %v421
        %461 = vmatprep.subr.bf16.mxu0 0
        %462 = vmatpush1.bf16.msra.mxu0 %v422
        %463 = vmatprep.subr.bf16.mxu0 0
        %464 = vmatpush1.bf16.msra.mxu0 %v423
        %465 = vmatprep.subr.bf16.mxu0 0
        %466 = vmatpush1.bf16.msra.mxu0 %v424
        %467 = vmatprep.subr.bf16.mxu0 0
        %468 = vmatpush1.bf16.msra.mxu0 %v425
        %469 = vmatprep.subr.bf16.mxu0 0
        %470 = vmatpush1.bf16.msra.mxu0 %v426
        %471 = vmatprep.subr.bf16.mxu0 0
        %472 = vmatpush1.bf16.msra.mxu0 %v427
        %473 = vmatprep.subr.bf16.mxu0 0
        %474 = vmatpush1.bf16.msra.mxu0 %v428
        %475 = vmatprep.subr.bf16.mxu0 0
        %476 = vmatpush1.bf16.msra.mxu0 %v429
        %477 = vmatprep.subr.bf16.mxu0 0
        %478 = vmatpush1.bf16.msra.mxu0 %v430
        %479 = vmatprep.mubr.bf16.mxu0 %v316
        %480 = vmatmul.mubr.bf16.gmra.mrb[0].mxu0 %v315
        %v481 = vpop.f32.mrb[0].mxu0
        %v482 = vadd.f32 0.0, %v481
        %v483 = vpop.f32.mrb[0].mxu0
        %v484 = vpop.f32.mrb[0].mxu0
        %v485 = vadd.f32 0.0, %v484
        %v486 = vpop.f32.mrb[0].mxu0
        %487 = vmatprep.mubr.bf16.mxu0 %v318
        %488 = vmatmul.mubr.bf16.gmra.mrb[0].mxu0 %v317
        %v489 = vpop.f32.mrb[0].mxu0
        %v490 = vadd.f32 0.0, %v489
        %v491 = vpop.f32.mrb[0].mxu0
        %v492 = vpop.f32.mrb[0].mxu0
        %v493 = vadd.f32 0.0, %v492
        %v494 = vpop.f32.mrb[0].mxu0
        %495 = vdwg.mxu0
        %v496 = vpack.c.bf16 %v485, %v482
        %v497 = vpack.c.bf16 %v493, %v490
        %v500 = vunpack.c.l.b16 %v496
        %v501 = vunpack.c.h.b16 %v496
        %v502 = vunpack.c.l.b16 %v497
        %v503 = vunpack.c.h.b16 %v497
        %v504 = vpack.c.b16 %v500, %v500
        %v505 = vpack.c.b16 %v501, %v501
        %v506 = vpack.c.b16 %v502, %v502
        %v507 = vpack.c.b16 %v503, %v503
        %512 = vst [vmem:[%s284] sm:$0xf] %v504
        %513 = vst [vmem:[%s284 + $0x4] sm:$0xf] %v505
        %514 = vst [vmem:[%s284 + $0x8] sm:$0xf] %v506
        %515 = vst [vmem:[%s284 + $0xc] sm:$0xf] %v507
        %v516 = vlaneseq
        %v517 = vshrl.u32 %v516, 7
        %v518 = vadd.s32 %v517, 8
        %v519 = vadd.s32 %v517, 16
        %v520 = vadd.s32 %v517, 24
        %s521 = smul.u32 %s26, 32
        %v522 = vstv %s521
        %v523 = vadd.s32 %v517, %v522
        %v524 = vadd.s32 %v518, %v522
        %v525 = vadd.s32 %v519, %v522
        %v526 = vadd.s32 %v520, %v522
        %vm527 = vcmp.lt.s32.totalorder %v523, 120
        %vm528 = vcmp.lt.s32.totalorder %v524, 120
        %vm529 = vcmp.lt.s32.totalorder %v525, 120
        %vm530 = vcmp.lt.s32.totalorder %v526, 120
        %v531 = vsel %vm527, 1, 0
        %v532 = vsel %vm528, 1, 0
        %v533 = vsel %vm529, 1, 0
        %v534 = vsel %vm530, 1, 0
        %vm535 = vcmp.eq.s32.totalorder %v531, 1
        %vm536 = vcmp.eq.s32.totalorder %v532, 1
        %vm537 = vcmp.eq.s32.totalorder %v533, 1
        %vm538 = vcmp.eq.s32.totalorder %v534, 1
        %v539 = vsel %vm535, %v482, 0.0
        %v540 = vsel %vm536, %v485, 0.0
        %v541 = vsel %vm537, %v490, 0.0
        %v542 = vsel %vm538, %v493, 0.0
        %v543 = vld [vmem:[#allocation2] sm:$0xff]
        %v544 = vadd.f32 %v539, %v540
        %v545 = vadd.f32 %v544, %v541
        %v546 = vadd.f32 %v545, %v542
        %v547 = vadd.f32 %v543, %v546
        %548 = vst [vmem:[#allocation2] sm:$0xff] %v547
        %v549 = vld [vmem:[#allocation3] sm:$0xff]
        %v550 = vmul.f32 %v539, %v539
        %v551 = vmul.f32 %v540, %v540
        %v552 = vmul.f32 %v541, %v541
        %v553 = vmul.f32 %v542, %v542
        %v554 = vadd.f32 %v550, %v551
        %v555 = vadd.f32 %v554, %v552
        %v556 = vadd.f32 %v555, %v553
        %v557 = vadd.f32 %v549, %v556
        %558 = vst [vmem:[#allocation3] sm:$0xff] %v557
        %p559 = scmp.eq.s32.totalorder %s26, 3
        // Predicated region
        $region49: #{tpu_custom_call.1} parent=35 // pred_check
          %p560 = pneg %p559
        $region50: #{tpu_custom_call.1} parent=35 // pred_check_branch
          %562 = sbr.rel (%p560) target = $region52
        $region51: #{tpu_custom_call.1} parent=35 // pred_region
          %v563 = vld [vmem:[#allocation2] sm:$0xff]
          %v564 = vrot.slane %v563, 4
          %v565 = vadd.f32 %v563, %v564
          %v566 = vrot.slane %v565, 2
          %v567 = vadd.f32 %v565, %v566
          %v568 = vrot.slane %v567, 1
          %v569 = vadd.f32 %v567, %v568
          %v570 = vmul.f32 %v569, 0.008333334
          %v571 = vld [vmem:[#allocation3] sm:$0xff]
          %v572 = vrot.slane %v571, 4
          %v573 = vadd.f32 %v571, %v572
          %v574 = vrot.slane %v573, 2
          %v575 = vadd.f32 %v573, %v574
          %v576 = vrot.slane %v575, 1
          %v577 = vadd.f32 %v575, %v576
          %v578 = vmul.f32 %v577, 0.008333334
          %v579 = vmul.f32 %v570, %v570
          %v580 = vsub.f32 %v578, %v579
          %v581 = vmax.f32 %v580, 0.0
          %v582 = vld [vmem:[%s2] sm:$0x1]
          %v583 = vadd.f32 %v581, 1e-05
          %v584 = vrsqrt.pop %v583
          %v585 = vmul.f32 %v582, %v584
          %586 = vst [vmem:[#allocation10] sm:$0x1] %v585
          %v587 = vld [vmem:[%s3] sm:$0x1]
          %v588 = vmul.f32 %v570, %v585
          %v589 = vsub.f32 %v587, %v588
          %590 = vst [vmem:[#allocation12] sm:$0x1] %v589
        $region52: #{tpu_custom_call.1} parent=35 // pred_fallthru
          _
        %s591 = sand.u32 %s123, 1
        %s592 = scalar_lea.sflag [#allocation6], %s591
        %s593 = sand.u32 %s123, 1
        %s594 = smul.addr %s593, 16
        %s595 = scalar_lea.vmem [#allocation9], %s594
        // Predicated region
        $region53: #{tpu_custom_call.1} parent=35 // pred_check
          %p596 = pneg %p133
        $region54: #{tpu_custom_call.1} parent=35 // pred_check_branch
          %598 = sbr.rel (%p596) target = $region56
        $region55: #{tpu_custom_call.1} parent=35 // pred_region
          %s599 = smul.u32 4, %s26
          %s600 = ssub.s32 15, %s599
          %p601 = scmp.lt.s32.totalorder %s600, 4
          %s602 = scalar_select %p601, %s600, 4
          %s603 = smul.u32 64, %s602
          %s605 = ssub.s32 256, %s603
          %606 = vsyncadd %s592, %s605
          %p607 = scmp.ne.s32.totalorder 0, %s603
          %s608 = smul.addr %s599, 64
          %s609 = scalar_lea.hbm %s4, %s608
          %s610 = smul.u32 4, %s602
          %s611 = sshll.u32 %s595, 4
          %s612 = int_to_ptr.vmem [resolvable:$true] %s611
          %s613 = sshll.u32 %s610, 4
          %617 = dma.vmem_to_hbm [thread:$0]  (%p607), %s612, %s613, %s609, %s592, 64, 64, 4
        $region56: #{tpu_custom_call.1} parent=35 // pred_fallthru
          _
        // Predicated region
        $region57: #{tpu_custom_call.1} parent=35 // pred_check
          %p618 = pneg %p154
        $region58: #{tpu_custom_call.1} parent=35 // pred_check_branch
          %620 = sbr.rel (%p618) target = $region60
        $region59: #{tpu_custom_call.1} parent=35 // pred_region
          %s622 = ssub.s32 16, 16
          %623 = vsyncadd [#allocation11], %s622
          %s625 = sshll.u32 [#allocation10], 4
          %s626 = int_to_ptr.vmem [resolvable:$true] %s625
          %628 = dma.vmem_to_hbm [thread:$0]  %s626, 16, %s5, [#allocation11]
        $region60: #{tpu_custom_call.1} parent=35 // pred_fallthru
          _
        // Predicated region
        $region61: #{tpu_custom_call.1} parent=35 // pred_check
          %p629 = pneg %p175
        $region62: #{tpu_custom_call.1} parent=35 // pred_check_branch
          %631 = sbr.rel (%p629) target = $region64
        $region63: #{tpu_custom_call.1} parent=35 // pred_region
          %s633 = ssub.s32 16, 16
          %634 = vsyncadd [#allocation11], %s633
          %s636 = sshll.u32 [#allocation12], 4
          %s637 = int_to_ptr.vmem [resolvable:$true] %s636
          %639 = dma.vmem_to_hbm [thread:$0]  %s637, 16, %s6, [#allocation11]
        $region64: #{tpu_custom_call.1} parent=35 // pred_fallthru
          _
        // Predicated region
        $region65: #{tpu_custom_call.1} parent=35 // pred_check
          %p640 = pneg %p154
        $region66: #{tpu_custom_call.1} parent=35 // pred_check_branch
          %642 = sbr.rel (%p640) target = $region68
        $region67: #{tpu_custom_call.1} parent=35 // pred_region
          %643 = dma.done [#allocation11], 16
        $region68: #{tpu_custom_call.1} parent=35 // pred_fallthru
          _
        // Predicated region
        $region69: #{tpu_custom_call.1} parent=35 // pred_check
          %p644 = pneg %p175
        $region70: #{tpu_custom_call.1} parent=35 // pred_check_branch
          %646 = sbr.rel (%p644) target = $region72
        $region71: #{tpu_custom_call.1} parent=35 // pred_region
          %647 = dma.done [#allocation11], 16
        $region72: #{tpu_custom_call.1} parent=35 // pred_fallthru
          _
      $region36: #{tpu_custom_call.1} parent=5 // pred_fallthru
        _
      %p648 = scmp.le.s32.totalorder 2, %s21
      // Predicated region
      $region73: #{tpu_custom_call.1} parent=5 // pred_check
        %p649 = pneg %p648
      $region74: #{tpu_custom_call.1} parent=5 // pred_check_branch
        %651 = sbr.rel (%p649) target = $region76
      $region75: #{tpu_custom_call.1} parent=5 // pred_region
        %s652 = ssub.s32 %s21, 2
        // Predicated region
        $region77: #{tpu_custom_call.1} parent=75 // pred_check
          %p653 = pneg %p139
        $region78: #{tpu_custom_call.1} parent=75 // pred_check_branch
          %655 = sbr.rel (%p653) target = $region80
        $region79: #{tpu_custom_call.1} parent=75 // pred_region
          %s656 = sand.u32 %s124, 1
          %s657 = scalar_lea.sflag [#allocation6], %s656
          %s658 = sand.u32 %s124, 1
          %s659 = smul.addr %s658, 16
          %s660 = scalar_lea.vmem [#allocation9], %s659
          %661 = dma.done %s657, 256
        $region80: #{tpu_custom_call.1} parent=75 // pred_fallthru
          _
      $region76: #{tpu_custom_call.1} parent=5 // pred_fallthru
        _
    $region6: #{tpu_custom_call.1} parent=1 // loop_footer
      %s25 = sadd.s32 1, %s21
    $region7: #{tpu_custom_call.1} parent=1 // loop_footer_branch
      %20 = sbr.rel target = $region3
    $region8: #{tpu_custom_call.1} parent=1 // loop_exit
      _
    %662 = vsyncpa [#allocation5], 1
    %s663 = scalar_lea.sflag [#allocation5], 1
    %664 = vsyncpa %s663, 1
    %665 = vsyncpa [#allocation8], 1
    %666 = vsyncpa [#allocation6], 1
    %s667 = scalar_lea.sflag [#allocation6], 1
    %668 = vsyncpa %s667, 1
    %669 = vsyncpa [#allocation11], 1

</llo_original>
